<compile_context>
chip_gen: v5e
topology: v5e:2x2
jax: 0.10.0
libtpu: 0.0.40
codegen_flags: <defaults>
</compile_context>

<pallas_src>
import jax
import jax.numpy as jnp
import numpy as np
from jax.experimental import pallas as pl
from jax.experimental.pallas import tpu as pltpu

DECAY_FACTOR = 0.1

# ---------------- config (small synthetic shapes) ----------------
NUM_NODES = 64
NODE_FEAT_DIM = 16
EDGE_FEAT_DIM = 12
MEMORY_DIM = 32
TIME_DIM = 8          # time_encoder output is unused in the PyTorch forward
EMBEDDING_DIM = 32
BATCH = 8


def _lin(x, w, b):
    return jnp.dot(x, w, preferred_element_type=jnp.float32) + b


# ---------------- the single fused Pallas kernel ----------------

def fused_tgn_kernel(
        mem_ref, lu_ref, idc_ref, ts_ref, feat_ref, ef_ref,
        wem1_ref, bem1_ref, wm2_ref, bm2_ref,
        wg_ref, bg_ref,
        wn_ref, bn_ref, wp1_ref, bp1_ref, wp2_ref, bp2_ref,
        wl1a_ref, wl1b_ref, bl1_ref, wl2_ref, bl2_ref,
        mem_out_ref, lu_out_ref, slab_out_ref):
    n_nodes, mdim = mem_ref.shape
    tb = idc_ref.shape[0]            # 2*B (src rows stacked on dst rows)
    b = ef_ref.shape[0]              # B

    # ---- one-hot gather matrix from the (pre-clipped) node ids ----
    onehot = (jax.lax.broadcasted_iota(jnp.int32, (tb, n_nodes), 1)
              == idc_ref[...]).astype(jnp.float32)                  # [2B, N]

    # ---- shared message path (edge_embedding folded into message layer 1) ----
    h1 = jnp.maximum(_lin(ef_ref[...], wem1_ref[...], bem1_ref[...]), 0.0)   # [B, M]
    msg_half = _lin(h1, wm2_ref[...], bm2_ref[...])                 # [B, M]
    msg = jnp.concatenate([msg_half, msg_half], axis=0)             # [2B, M]

    # ---- gather memory / last_update for src+dst rows (one-hot MXU gather) ----
    mem_tbl = mem_ref[...]                                          # [N, M]
    lu_row = lu_ref[...]                                            # [1, N]
    mem_g = jnp.dot(onehot, mem_tbl, preferred_element_type=jnp.float32)   # [2B, M]
    lu_g = jnp.sum(onehot * lu_row, axis=1, keepdims=True)          # [2B, 1]
    ts2 = ts_ref[...]                                               # [2B, 1]

    # ---- temporal decay + fully fused GRUCell update (n-gate folded in) ----
    score_u = jnp.exp(-DECAY_FACTOR * jnp.maximum(ts2 - lu_g, 0.0))
    h = mem_g * score_u                                             # decayed memory
    xh = jnp.concatenate([msg, h], axis=1)                          # [2B, 2M]
    comb = _lin(xh, wg_ref[...], bg_ref[...])                       # [2B, 4M] (128 lanes)
    rz = jax.nn.sigmoid(comb[:, :2 * mdim])                         # one 64-lane EUP pass
    r = rz[:, :mdim]
    z = rz[:, mdim:]
    gh_n = comb[:, 3 * mdim:]                                       # h @ Whh_n + bhh_n
    n_gate = jnp.tanh(comb[:, 2 * mdim:3 * mdim] + (r - 1.0) * gh_n)  # = gi_n + r*gh_n
    new_mem = (1.0 - z) * n_gate + z * h                            # [2B, M]

    # ---- scatter updated rows back (algebraic delta form, no onehot_t) ----
    # TODO(synk): assumes node ids are unique within the combined src+dst batch;
    # PyTorch's sequential per-row writes differ for duplicate ids.
    delta = new_mem - mem_g                                         # [2B, M]
    scat = jax.lax.dot_general(onehot, delta,
                               dimension_numbers=(((0,), (0,)), ((), ())),
                               preferred_element_type=jnp.float32)  # [N, M]
    mem_out_ref[...] = mem_tbl + scat
    lu_out_ref[...] = lu_row + jnp.sum(onehot * (ts2 - lu_g), axis=0,
                                       keepdims=True)               # [1, N]

    # ---- embeddings for src+dst from the updated state ----
    # Post-update re-gather is the identity (unique ids): mem_g2 == new_mem,
    # lu_g2 == ts2  =>  memory_age == 0, decay/attention score == 1,
    # attended == new_mem.  (Matches PyTorch, which computes embeddings after
    # both memory updates.)
    attended = new_mem                                              # [2B, M]
    node_emb = _lin(feat_ref[...], wn_ref[...], bn_ref[...])        # [2B, M]
    hp = jnp.maximum(
        _lin(jnp.concatenate([attended, node_emb], axis=1),
             wp1_ref[...], bp1_ref[...]), 0.0)                      # [2B, E]
    emb = _lin(hp, wp2_ref[...], bp2_ref[...])                      # [2B, E]
    # TODO(synk): time_encoder(timestamps) is computed but discarded in the
    # PyTorch forward, so it is intentionally skipped here.

    # ---- link predictor (embeddings never leave VMEM/vregs) ----
    s_emb = emb[:b]
    d_emb = emb[b:]
    hl = jnp.maximum(
        jnp.dot(s_emb, wl1a_ref[...], preferred_element_type=jnp.float32)
        + jnp.dot(d_emb, wl1b_ref[...], preferred_element_type=jnp.float32)
        + bl1_ref[...], 0.0)
    prob = jax.nn.sigmoid(_lin(hl, wl2_ref[...], bl2_ref[...]))     # [B, 1]

    # ---- pack per-edge scalars into one lane-dense [B, 128] slab ----
    # col 0: link prob; cols 1,2: src/dst decay scores (==1 post-update);
    # cols 3,4: src/dst memory ages (==0 post-update); rest zero.
    cols = jax.lax.broadcasted_iota(jnp.int32, (b, 128), 1)
    score_cols = ((cols == 1) | (cols == 2)).astype(jnp.float32)
    slab_out_ref[...] = jnp.where(cols == 0, prob, score_cols)


# ---------------- wrapper ----------------

def _vmem():
    return pl.BlockSpec(memory_space=pltpu.MemorySpace.VMEM)


def prep_kernel_params(p):
    """One-time host-side weight prep (layer fusions); not done per step."""
    m = MEMORY_DIM
    # edge_embedding folded into message_processor layer 1 (no nonlinearity between)
    wem1 = p['we'] @ p['wm1']                                   # [edge_feat, M]
    bem1 = p['be'] @ p['wm1'] + p['bm1']                        # [1, M]
    # GRU gi/gh matmuls + n-gate gh_n fused into one [2M, 4M] matmul
    wg = jnp.concatenate([p['wih'], p['whh']], axis=0)          # [2M, 3M]
    wg_n = jnp.concatenate(
        [jnp.zeros((m, m), jnp.float32), p['whh'][:, 2 * m:]], axis=0)  # [2M, M]
    wg_full = jnp.concatenate([wg, wg_n], axis=1)               # [2M, 4M] = [64, 128]
    bg_full = jnp.concatenate(
        [p['bih'] + p['bhh'], p['bhh'][:, 2 * m:]], axis=1)     # [1, 4M] = [1, 128]
    # embedding_projection layer 1 fused: concat([attended, node_emb]) @ [wp1a; wp1b]
    wp1 = jnp.concatenate([p['wp1a'], p['wp1b']], axis=0)       # [2M, E]
    return dict(
        wem1=wem1, bem1=bem1, wm2=p['wm2'], bm2=p['bm2'],
        wg=wg_full, bg=bg_full,
        wn=p['wn'], bn=p['bn'],
        wp1=wp1, bp1=p['bp1'], wp2=p['wp2'], bp2=p['bp2'],
        wl1a=p['wl1a'], wl1b=p['wl1b'], bl1=p['bl1'], wl2=p['wl2'], bl2=p['bl2'],
    )


_W_ORDER = ('wem1', 'bem1', 'wm2', 'bm2', 'wg', 'bg',
            'wn', 'bn', 'wp1', 'bp1', 'wp2', 'bp2',
            'wl1a', 'wl1b', 'bl1', 'wl2', 'bl2')


def forward_pallas(kparams, memory, lu_row, src_ids, dst_ids,
                   src_feat, dst_feat, timestamps, edge_feat):
    """memory: [N, M] f32; lu_row: [1, N] f32 (lane-dense last_update)."""
    ids_all = jnp.clip(jnp.concatenate([src_ids, dst_ids]).astype(jnp.int32),
                       0, NUM_NODES - 1)
    ids_col = ids_all[:, None]                 # [2B, 1]
    ts2 = jnp.concatenate([timestamps, timestamps])[:, None].astype(jnp.float32)
    feats_all = jnp.concatenate([src_feat, dst_feat], axis=0)

    weights = tuple(kparams[k] for k in _W_ORDER)
    args = (memory, lu_row, ids_col, ts2, feats_all, edge_feat) + weights

    new_mem, new_lu_row, slab = pl.pallas_call(
        fused_tgn_kernel,
        out_shape=(jax.ShapeDtypeStruct((NUM_NODES, MEMORY_DIM), jnp.float32),
                   jax.ShapeDtypeStruct((1, NUM_NODES), jnp.float32),
                   jax.ShapeDtypeStruct((BATCH, 128), jnp.float32)),
        in_specs=[_vmem()] * len(args),
        out_specs=(_vmem(), _vmem(), _vmem()),
        input_output_aliases={0: 0, 1: 1},     # memory table / last_update in-place
    )(*args)

    link_probs = slab[:, 0:1]
    src_score = slab[:, 1]
    dst_score = slab[:, 2]
    decay_analysis = {
        'src_decay_scores': src_score,
        'dst_decay_scores': dst_score,
        'src_attention_scores': src_score,
        'dst_attention_scores': dst_score,
        'src_memory_age': slab[:, 3],
        'dst_memory_age': slab[:, 4],
        'avg_decay_score': (src_score.mean() + dst_score.mean()) / 2.0,
    }
    return link_probs, decay_analysis, new_mem, new_lu_row


# ---------------- pure-JAX reference (PyTorch-faithful, sequential updates) ----------------

def forward_ref(params, memory, last_update, src_ids, dst_ids,
                src_feat, dst_feat, timestamps, edge_feat):
    p = params
    ts_col = timestamps[:, None]
    edge_emb = edge_feat @ p['we'] + p['be']
    h1 = jnp.maximum(edge_emb @ p['wm1'] + p['bm1'], 0.0)
    msg = h1 @ p['wm2'] + p['bm2']

    def do_update(mem, lu, ids):
        cid = jnp.clip(ids, 0, NUM_NODES - 1)
        mem_g, lu_g = mem[cid], lu[cid][:, None]
        score = jnp.exp(-DECAY_FACTOR * jnp.maximum(ts_col - lu_g, 0.0))
        h = mem_g * score
        m = MEMORY_DIM
        gi = msg @ p['wih'] + p['bih']
        gh = h @ p['whh'] + p['bhh']
        r = jax.nn.sigmoid(gi[:, :m] + gh[:, :m])
        z = jax.nn.sigmoid(gi[:, m:2 * m] + gh[:, m:2 * m])
        n = jnp.tanh(gi[:, 2 * m:] + r * gh[:, 2 * m:])
        new_mem = (1.0 - z) * n + z * h
        return mem.at[cid].set(new_mem), lu.at[cid].set(timestamps)

    memory, last_update = do_update(memory, last_update, src_ids)
    memory, last_update = do_update(memory, last_update, dst_ids)

    def compute_embeddings(ids, feats):
        cid = jnp.clip(ids, 0, NUM_NODES - 1)
        mem_g, lu_g = memory[cid], last_update[cid][:, None]
        score = jnp.exp(-DECAY_FACTOR * jnp.maximum(ts_col - lu_g, 0.0))
        attended = mem_g * score * score
        node_emb = feats @ p['wn'] + p['bn']
        h = jnp.maximum(attended @ p['wp1a'] + node_emb @ p['wp1b'] + p['bp1'], 0.0)
        return h @ p['wp2'] + p['bp2']

    s_emb = compute_embeddings(src_ids, src_feat)
    d_emb = compute_embeddings(dst_ids, dst_feat)
    h = jnp.maximum(s_emb @ p['wl1a'] + d_emb @ p['wl1b'] + p['bl1'], 0.0)
    probs = jax.nn.sigmoid(h @ p['wl2'] + p['bl2'])
    return probs, memory, last_update


# ---------------- parameter init ----------------

def init_params(key):
    keys = iter(jax.random.split(key, 32))

    def w(shape, scale=0.2):
        return (scale * jax.random.normal(next(keys), shape)).astype(jnp.float32)

    M, E = MEMORY_DIM, EMBEDDING_DIM
    return {
        'we': w((EDGE_FEAT_DIM, M)), 'be': w((1, M)),
        'wm1': w((M, M)), 'bm1': w((1, M)),
        'wm2': w((M, M)), 'bm2': w((1, M)),
        # GRUCell (gate order r, z, n), stored as [in, 3*hidden]
        'wih': w((M, 3 * M)), 'bih': w((1, 3 * M)),
        'whh': w((M, 3 * M)), 'bhh': w((1, 3 * M)),
        'wn': w((NODE_FEAT_DIM, M)), 'bn': w((1, M)),
        'wp1a': w((M, E)), 'wp1b': w((M, E)), 'bp1': w((1, E)),
        'wp2': w((E, E)), 'bp2': w((1, E)),
        'wl1a': w((E, E)), 'wl1b': w((E, E)), 'bl1': w((1, E)),
        'wl2': w((E, 1)), 'bl2': w((1, 1)),
    }


if __name__ == "__main__":
    key = jax.random.PRNGKey(0)
    k_par, k_mem, k_lu, k_ids, k_sf, k_df, k_ts, k_ef = jax.random.split(key, 8)

    params = init_params(k_par)
    kparams = prep_kernel_params(params)

    memory0 = (0.5 * jax.random.normal(k_mem, (NUM_NODES, MEMORY_DIM))).astype(jnp.float32)
    last_update0 = jax.random.uniform(k_lu, (NUM_NODES,), minval=0.0,
                                      maxval=5.0).astype(jnp.float32)

    perm = jax.random.permutation(k_ids, NUM_NODES)    # unique ids across src+dst
    src_ids = perm[:BATCH].astype(jnp.int32)
    dst_ids = perm[BATCH:2 * BATCH].astype(jnp.int32)
    src_feat = jax.random.normal(k_sf, (BATCH, NODE_FEAT_DIM)).astype(jnp.float32)
    dst_feat = jax.random.normal(k_df, (BATCH, NODE_FEAT_DIM)).astype(jnp.float32)
    timestamps = jax.random.uniform(k_ts, (BATCH,), minval=5.0,
                                    maxval=10.0).astype(jnp.float32)
    edge_feat = jax.random.normal(k_ef, (BATCH, EDGE_FEAT_DIM)).astype(jnp.float32)

    # reference first (runs eagerly; memory0 / last_update0 still valid afterwards)
    ref_probs, ref_mem, ref_lu = forward_ref(
        params, memory0, last_update0, src_ids, dst_ids,
        src_feat, dst_feat, timestamps, edge_feat)

    # Donate the state tensors so input_output_aliases executes truly in place.
    fwd = jax.jit(forward_pallas, donate_argnums=(1, 2))
    lu_row0 = last_update0[None, :]                     # [1, N] lane-dense copy
    link_probs, decay_analysis, new_mem, new_lu_row = fwd(
        kparams, memory0, lu_row0, src_ids, dst_ids,
        src_feat, dst_feat, timestamps, edge_feat)
    jax.block_until_ready(link_probs)
    new_lu = new_lu_row[0]

    np.testing.assert_allclose(np.asarray(link_probs), np.asarray(ref_probs),
                               rtol=2e-3, atol=2e-3)
    np.testing.assert_allclose(np.asarray(new_mem), np.asarray(ref_mem),
                               rtol=2e-3, atol=2e-3)
    np.testing.assert_allclose(np.asarray(new_lu), np.asarray(ref_lu),
                               rtol=2e-3, atol=2e-3)
    assert link_probs.shape == (BATCH, 1)
    assert decay_analysis['src_decay_scores'].shape == (BATCH,)
    print("KERNEL_OK")
</pallas_src>

<mosaic_0001>
module attributes {stable_mosaic.version = 11 : i64} {
  func.func @fused_tgn_kernel(%arg0: memref<64x32xf32, #tpu.memory_space<vmem>>, %arg1: memref<1x64xf32, #tpu.memory_space<vmem>>, %arg2: memref<16x1xi32, #tpu.memory_space<vmem>>, %arg3: memref<16x1xf32, #tpu.memory_space<vmem>>, %arg4: memref<16x16xf32, #tpu.memory_space<vmem>>, %arg5: memref<8x12xf32, #tpu.memory_space<vmem>>, %arg6: memref<12x32xf32, #tpu.memory_space<vmem>>, %arg7: memref<1x32xf32, #tpu.memory_space<vmem>>, %arg8: memref<32x32xf32, #tpu.memory_space<vmem>>, %arg9: memref<1x32xf32, #tpu.memory_space<vmem>>, %arg10: memref<64x128xf32, #tpu.memory_space<vmem>>, %arg11: memref<1x128xf32, #tpu.memory_space<vmem>>, %arg12: memref<16x32xf32, #tpu.memory_space<vmem>>, %arg13: memref<1x32xf32, #tpu.memory_space<vmem>>, %arg14: memref<64x32xf32, #tpu.memory_space<vmem>>, %arg15: memref<1x32xf32, #tpu.memory_space<vmem>>, %arg16: memref<32x32xf32, #tpu.memory_space<vmem>>, %arg17: memref<1x32xf32, #tpu.memory_space<vmem>>, %arg18: memref<32x32xf32, #tpu.memory_space<vmem>>, %arg19: memref<32x32xf32, #tpu.memory_space<vmem>>, %arg20: memref<1x32xf32, #tpu.memory_space<vmem>>, %arg21: memref<32x1xf32, #tpu.memory_space<vmem>>, %arg22: memref<1x1xf32, #tpu.memory_space<vmem>>, %arg23: memref<64x32xf32, #tpu.memory_space<vmem>>, %arg24: memref<1x64xf32, #tpu.memory_space<vmem>>, %arg25: memref<8x128xf32, #tpu.memory_space<vmem>>) attributes {dimension_semantics = [], scalar_prefetch = 0 : i64, scratch_operands = 0 : i64, tpu.core_type = #tpu.core_type<tc>} {
    %0 = tpu.iota {dimensions = array<i32: 1>} : vector<16x64xi32>
    %c0 = arith.constant 0 : index
    %c0_0 = arith.constant 0 : index
    %1 = vector.load %arg2[%c0, %c0_0] : memref<16x1xi32, #tpu.memory_space<vmem>>, vector<16x1xi32>
    %2 = vector.broadcast %1 : vector<16x1xi32> to vector<16x64xi32>
    %3 = arith.cmpi eq, %0, %2 : vector<16x64xi32>
    %4 = arith.extui %3 : vector<16x64xi1> to vector<16x64xi32>
    %5 = arith.sitofp %4 : vector<16x64xi32> to vector<16x64xf32>
    %c0_1 = arith.constant 0 : index
    %c0_2 = arith.constant 0 : index
    %6 = vector.load %arg5[%c0_1, %c0_2] : memref<8x12xf32, #tpu.memory_space<vmem>>, vector<8x12xf32>
    %c0_3 = arith.constant 0 : index
    %c0_4 = arith.constant 0 : index
    %7 = vector.load %arg6[%c0_3, %c0_4] : memref<12x32xf32, #tpu.memory_space<vmem>>, vector<12x32xf32>
    %c0_5 = arith.constant 0 : index
    %c0_6 = arith.constant 0 : index
    %8 = vector.load %arg7[%c0_5, %c0_6] : memref<1x32xf32, #tpu.memory_space<vmem>>, vector<1x32xf32>
    %cst = arith.constant dense<0.000000e+00> : vector<8x32xf32>
    %9 = tpu.matmul %6, %7, %cst {dimension_numbers = #tpu.dot_dimension_numbers<[1], [0], [0], [1], [0, 0, 1, 1], [], []>} : vector<8x12xf32>, vector<12x32xf32>, vector<8x32xf32> -> vector<8x32xf32>
    %10 = vector.broadcast %8 : vector<1x32xf32> to vector<8x32xf32>
    %11 = arith.addf %9, %10 : vector<8x32xf32>
    %cst_7 = arith.constant 0.000000e+00 : f32
    %12 = vector.broadcast %cst_7 : f32 to vector<8x32xf32>
    %13 = arith.maximumf %11, %12 : vector<8x32xf32>
    %c0_8 = arith.constant 0 : index
    %c0_9 = arith.constant 0 : index
    %14 = vector.load %arg8[%c0_8, %c0_9] : memref<32x32xf32, #tpu.memory_space<vmem>>, vector<32x32xf32>
    %c0_10 = arith.constant 0 : index
    %c0_11 = arith.constant 0 : index
    %15 = vector.load %arg9[%c0_10, %c0_11] : memref<1x32xf32, #tpu.memory_space<vmem>>, vector<1x32xf32>
    %cst_12 = arith.constant dense<0.000000e+00> : vector<8x32xf32>
    %16 = tpu.matmul %13, %14, %cst_12 {dimension_numbers = #tpu.dot_dimension_numbers<[1], [0], [0], [1], [0, 0, 1, 1], [], []>} : vector<8x32xf32>, vector<32x32xf32>, vector<8x32xf32> -> vector<8x32xf32>
    %17 = vector.broadcast %15 : vector<1x32xf32> to vector<8x32xf32>
    %18 = arith.addf %16, %17 : vector<8x32xf32>
    %19 = tpu.concatenate %18, %18 in 0 : vector<8x32xf32>, vector<8x32xf32> -> vector<16x32xf32>
    %c0_13 = arith.constant 0 : index
    %c0_14 = arith.constant 0 : index
    %20 = vector.load %arg0[%c0_13, %c0_14] : memref<64x32xf32, #tpu.memory_space<vmem>>, vector<64x32xf32>
    %c0_15 = arith.constant 0 : index
    %c0_16 = arith.constant 0 : index
    %21 = vector.load %arg1[%c0_15, %c0_16] : memref<1x64xf32, #tpu.memory_space<vmem>>, vector<1x64xf32>
    %cst_17 = arith.constant dense<0.000000e+00> : vector<16x32xf32>
    %22 = tpu.matmul %5, %20, %cst_17 {dimension_numbers = #tpu.dot_dimension_numbers<[1], [0], [0], [1], [0, 0, 1, 1], [], []>} : vector<16x64xf32>, vector<64x32xf32>, vector<16x32xf32> -> vector<16x32xf32>
    %23 = vector.broadcast %21 : vector<1x64xf32> to vector<16x64xf32>
    %24 = arith.mulf %5, %23 : vector<16x64xf32>
    %cst_18 = arith.constant dense<0.000000e+00> : vector<16xf32>
    %25 = vector.multi_reduction <add>, %24, %cst_18 [1] : vector<16x64xf32> to vector<16xf32>
    %26 = vector.shape_cast %25 : vector<16xf32> to vector<16x1xf32>
    %c0_19 = arith.constant 0 : index
    %c0_20 = arith.constant 0 : index
    %27 = vector.load %arg3[%c0_19, %c0_20] : memref<16x1xf32, #tpu.memory_space<vmem>>, vector<16x1xf32>
    %28 = arith.subf %27, %26 : vector<16x1xf32>
    %cst_21 = arith.constant 0.000000e+00 : f32
    %29 = vector.broadcast %cst_21 : f32 to vector<16x1xf32>
    %30 = arith.maximumf %28, %29 : vector<16x1xf32>
    %cst_22 = arith.constant -1.000000e-01 : f32
    %31 = vector.broadcast %cst_22 : f32 to vector<16x1xf32>
    %32 = arith.mulf %31, %30 : vector<16x1xf32>
    %33 = math.exp %32 : vector<16x1xf32>
    %34 = vector.broadcast %33 : vector<16x1xf32> to vector<16x32xf32>
    %35 = arith.mulf %22, %34 : vector<16x32xf32>
    %36 = tpu.concatenate %19, %35 in 1 : vector<16x32xf32>, vector<16x32xf32> -> vector<16x64xf32>
    %c0_23 = arith.constant 0 : index
    %c0_24 = arith.constant 0 : index
    %37 = vector.load %arg10[%c0_23, %c0_24] : memref<64x128xf32, #tpu.memory_space<vmem>>, vector<64x128xf32>
    %c0_25 = arith.constant 0 : index
    %c0_26 = arith.constant 0 : index
    %38 = vector.load %arg11[%c0_25, %c0_26] : memref<1x128xf32, #tpu.memory_space<vmem>>, vector<1x128xf32>
    %cst_27 = arith.constant dense<0.000000e+00> : vector<16x128xf32>
    %39 = tpu.matmul %36, %37, %cst_27 {dimension_numbers = #tpu.dot_dimension_numbers<[1], [0], [0], [1], [0, 0, 1, 1], [], []>} : vector<16x64xf32>, vector<64x128xf32>, vector<16x128xf32> -> vector<16x128xf32>
    %40 = vector.broadcast %38 : vector<1x128xf32> to vector<16x128xf32>
    %41 = arith.addf %39, %40 : vector<16x128xf32>
    %42 = vector.extract_strided_slice %41 {offsets = [0, 0], sizes = [16, 64], strides = [1, 1]} : vector<16x128xf32> to vector<16x64xf32>
    %43 = arith.negf %42 : vector<16x64xf32>
    %44 = math.exp %43 : vector<16x64xf32>
    %cst_28 = arith.constant 1.000000e+00 : f32
    %45 = vector.broadcast %cst_28 : f32 to vector<16x64xf32>
    %46 = arith.addf %45, %44 : vector<16x64xf32>
    %47 = arith.divf %45, %46 : vector<16x64xf32>
    %48 = vector.extract_strided_slice %47 {offsets = [0, 0], sizes = [16, 32], strides = [1, 1]} : vector<16x64xf32> to vector<16x32xf32>
    %49 = vector.extract_strided_slice %47 {offsets = [0, 32], sizes = [16, 32], strides = [1, 1]} : vector<16x64xf32> to vector<16x32xf32>
    %50 = vector.extract_strided_slice %41 {offsets = [0, 96], sizes = [16, 32], strides = [1, 1]} : vector<16x128xf32> to vector<16x32xf32>
    %51 = vector.extract_strided_slice %41 {offsets = [0, 64], sizes = [16, 32], strides = [1, 1]} : vector<16x128xf32> to vector<16x32xf32>
    %cst_29 = arith.constant 1.000000e+00 : f32
    %52 = vector.broadcast %cst_29 : f32 to vector<16x32xf32>
    %53 = arith.subf %48, %52 : vector<16x32xf32>
    %54 = arith.mulf %53, %50 : vector<16x32xf32>
    %55 = arith.addf %51, %54 : vector<16x32xf32>
    %56 = math.tanh %55 : vector<16x32xf32>
    %cst_30 = arith.constant 1.000000e+00 : f32
    %57 = vector.broadcast %cst_30 : f32 to vector<16x32xf32>
    %58 = arith.subf %57, %49 : vector<16x32xf32>
    %59 = arith.mulf %58, %56 : vector<16x32xf32>
    %60 = arith.mulf %49, %35 : vector<16x32xf32>
    %61 = arith.addf %59, %60 : vector<16x32xf32>
    %62 = arith.subf %61, %22 : vector<16x32xf32>
    %cst_31 = arith.constant dense<0.000000e+00> : vector<64x32xf32>
    %63 = tpu.matmul %5, %62, %cst_31 {dimension_numbers = #tpu.dot_dimension_numbers<[0], [0], [1], [1], [0, 1, 1, 1], [], []>} : vector<16x64xf32>, vector<16x32xf32>, vector<64x32xf32> -> vector<64x32xf32>
    %64 = arith.addf %20, %63 : vector<64x32xf32>
    %c0_32 = arith.constant 0 : index
    %c0_33 = arith.constant 0 : index
    %65 = vector.load %arg23[%c0_32, %c0_33] : memref<64x32xf32, #tpu.memory_space<vmem>>, vector<64x32xf32>
    tpu.vector_store %arg23[%c0_32, %c0_33], %64 {strides = array<i32>} : memref<64x32xf32, #tpu.memory_space<vmem>>, vector<64x32xf32>,
    %66 = arith.subf %27, %26 : vector<16x1xf32>
    %67 = vector.broadcast %66 : vector<16x1xf32> to vector<16x64xf32>
    %68 = arith.mulf %5, %67 : vector<16x64xf32>
    %cst_34 = arith.constant dense<0.000000e+00> : vector<64xf32>
    %69 = vector.multi_reduction <add>, %68, %cst_34 [0] : vector<16x64xf32> to vector<64xf32>
    %70 = vector.shape_cast %69 : vector<64xf32> to vector<1x64xf32>
    %71 = arith.addf %21, %70 : vector<1x64xf32>
    %c0_35 = arith.constant 0 : index
    %c0_36 = arith.constant 0 : index
    %72 = vector.load %arg24[%c0_35, %c0_36] : memref<1x64xf32, #tpu.memory_space<vmem>>, vector<1x64xf32>
    tpu.vector_store %arg24[%c0_35, %c0_36], %71 {strides = array<i32>} : memref<1x64xf32, #tpu.memory_space<vmem>>, vector<1x64xf32>,
    %c0_37 = arith.constant 0 : index
    %c0_38 = arith.constant 0 : index
    %73 = vector.load %arg4[%c0_37, %c0_38] : memref<16x16xf32, #tpu.memory_space<vmem>>, vector<16x16xf32>
    %c0_39 = arith.constant 0 : index
    %c0_40 = arith.constant 0 : index
    %74 = vector.load %arg12[%c0_39, %c0_40] : memref<16x32xf32, #tpu.memory_space<vmem>>, vector<16x32xf32>
    %c0_41 = arith.constant 0 : index
    %c0_42 = arith.constant 0 : index
    %75 = vector.load %arg13[%c0_41, %c0_42] : memref<1x32xf32, #tpu.memory_space<vmem>>, vector<1x32xf32>
    %cst_43 = arith.constant dense<0.000000e+00> : vector<16x32xf32>
    %76 = tpu.matmul %73, %74, %cst_43 {dimension_numbers = #tpu.dot_dimension_numbers<[1], [0], [0], [1], [0, 0, 1, 1], [], []>} : vector<16x16xf32>, vector<16x32xf32>, vector<16x32xf32> -> vector<16x32xf32>
    %77 = vector.broadcast %75 : vector<1x32xf32> to vector<16x32xf32>
    %78 = arith.addf %76, %77 : vector<16x32xf32>
    %79 = tpu.concatenate %61, %78 in 1 : vector<16x32xf32>, vector<16x32xf32> -> vector<16x64xf32>
    %c0_44 = arith.constant 0 : index
    %c0_45 = arith.constant 0 : index
    %80 = vector.load %arg14[%c0_44, %c0_45] : memref<64x32xf32, #tpu.memory_space<vmem>>, vector<64x32xf32>
    %c0_46 = arith.constant 0 : index
    %c0_47 = arith.constant 0 : index
    %81 = vector.load %arg15[%c0_46, %c0_47] : memref<1x32xf32, #tpu.memory_space<vmem>>, vector<1x32xf32>
    %cst_48 = arith.constant dense<0.000000e+00> : vector<16x32xf32>
    %82 = tpu.matmul %79, %80, %cst_48 {dimension_numbers = #tpu.dot_dimension_numbers<[1], [0], [0], [1], [0, 0, 1, 1], [], []>} : vector<16x64xf32>, vector<64x32xf32>, vector<16x32xf32> -> vector<16x32xf32>
    %83 = vector.broadcast %81 : vector<1x32xf32> to vector<16x32xf32>
    %84 = arith.addf %82, %83 : vector<16x32xf32>
    %cst_49 = arith.constant 0.000000e+00 : f32
    %85 = vector.broadcast %cst_49 : f32 to vector<16x32xf32>
    %86 = arith.maximumf %84, %85 : vector<16x32xf32>
    %c0_50 = arith.constant 0 : index
    %c0_51 = arith.constant 0 : index
    %87 = vector.load %arg16[%c0_50, %c0_51] : memref<32x32xf32, #tpu.memory_space<vmem>>, vector<32x32xf32>
    %c0_52 = arith.constant 0 : index
    %c0_53 = arith.constant 0 : index
    %88 = vector.load %arg17[%c0_52, %c0_53] : memref<1x32xf32, #tpu.memory_space<vmem>>, vector<1x32xf32>
    %cst_54 = arith.constant dense<0.000000e+00> : vector<16x32xf32>
    %89 = tpu.matmul %86, %87, %cst_54 {dimension_numbers = #tpu.dot_dimension_numbers<[1], [0], [0], [1], [0, 0, 1, 1], [], []>} : vector<16x32xf32>, vector<32x32xf32>, vector<16x32xf32> -> vector<16x32xf32>
    %90 = vector.broadcast %88 : vector<1x32xf32> to vector<16x32xf32>
    %91 = arith.addf %89, %90 : vector<16x32xf32>
    %92 = vector.extract_strided_slice %91 {offsets = [0, 0], sizes = [8, 32], strides = [1, 1]} : vector<16x32xf32> to vector<8x32xf32>
    %93 = vector.extract_strided_slice %91 {offsets = [8, 0], sizes = [8, 32], strides = [1, 1]} : vector<16x32xf32> to vector<8x32xf32>
    %c0_55 = arith.constant 0 : index
    %c0_56 = arith.constant 0 : index
    %94 = vector.load %arg18[%c0_55, %c0_56] : memref<32x32xf32, #tpu.memory_space<vmem>>, vector<32x32xf32>
    %cst_57 = arith.constant dense<0.000000e+00> : vector<8x32xf32>
    %95 = tpu.matmul %92, %94, %cst_57 {dimension_numbers = #tpu.dot_dimension_numbers<[1], [0], [0], [1], [0, 0, 1, 1], [], []>} : vector<8x32xf32>, vector<32x32xf32>, vector<8x32xf32> -> vector<8x32xf32>
    %c0_58 = arith.constant 0 : index
    %c0_59 = arith.constant 0 : index
    %96 = vector.load %arg19[%c0_58, %c0_59] : memref<32x32xf32, #tpu.memory_space<vmem>>, vector<32x32xf32>
    %cst_60 = arith.constant dense<0.000000e+00> : vector<8x32xf32>
    %97 = tpu.matmul %93, %96, %cst_60 {dimension_numbers = #tpu.dot_dimension_numbers<[1], [0], [0], [1], [0, 0, 1, 1], [], []>} : vector<8x32xf32>, vector<32x32xf32>, vector<8x32xf32> -> vector<8x32xf32>
    %98 = arith.addf %95, %97 : vector<8x32xf32>
    %c0_61 = arith.constant 0 : index
    %c0_62 = arith.constant 0 : index
    %99 = vector.load %arg20[%c0_61, %c0_62] : memref<1x32xf32, #tpu.memory_space<vmem>>, vector<1x32xf32>
    %100 = vector.broadcast %99 : vector<1x32xf32> to vector<8x32xf32>
    %101 = arith.addf %98, %100 : vector<8x32xf32>
    %cst_63 = arith.constant 0.000000e+00 : f32
    %102 = vector.broadcast %cst_63 : f32 to vector<8x32xf32>
    %103 = arith.maximumf %101, %102 : vector<8x32xf32>
    %c0_64 = arith.constant 0 : index
    %c0_65 = arith.constant 0 : index
    %104 = vector.load %arg21[%c0_64, %c0_65] : memref<32x1xf32, #tpu.memory_space<vmem>>, vector<32x1xf32>
    %c0_66 = arith.constant 0 : index
    %c0_67 = arith.constant 0 : index
    %105 = vector.load %arg22[%c0_66, %c0_67] : memref<1x1xf32, #tpu.memory_space<vmem>>, vector<1x1xf32>
    %cst_68 = arith.constant dense<0.000000e+00> : vector<8x1xf32>
    %106 = tpu.matmul %103, %104, %cst_68 {dimension_numbers = #tpu.dot_dimension_numbers<[1], [0], [0], [1], [0, 0, 1, 1], [], []>} : vector<8x32xf32>, vector<32x1xf32>, vector<8x1xf32> -> vector<8x1xf32>
    %107 = vector.broadcast %105 : vector<1x1xf32> to vector<8x1xf32>
    %108 = arith.addf %106, %107 : vector<8x1xf32>
    %109 = arith.negf %108 : vector<8x1xf32>
    %110 = math.exp %109 : vector<8x1xf32>
    %cst_69 = arith.constant 1.000000e+00 : f32
    %111 = vector.broadcast %cst_69 : f32 to vector<8x1xf32>
    %112 = arith.addf %111, %110 : vector<8x1xf32>
    %113 = arith.divf %111, %112 : vector<8x1xf32>
    %114 = tpu.iota {dimensions = array<i32: 1>} : vector<8x128xi32>
    %c1_i32 = arith.constant 1 : i32
    %115 = vector.broadcast %c1_i32 : i32 to vector<8x128xi32>
    %116 = arith.cmpi eq, %114, %115 : vector<8x128xi32>
    %c2_i32 = arith.constant 2 : i32
    %117 = vector.broadcast %c2_i32 : i32 to vector<8x128xi32>
    %118 = arith.cmpi eq, %114, %117 : vector<8x128xi32>
    %119 = arith.ori %116, %118 : vector<8x128xi1>
    %120 = arith.extui %119 : vector<8x128xi1> to vector<8x128xi32>
    %121 = arith.sitofp %120 : vector<8x128xi32> to vector<8x128xf32>
    %c0_i32 = arith.constant 0 : i32
    %122 = vector.broadcast %c0_i32 : i32 to vector<8x128xi32>
    %123 = arith.cmpi eq, %114, %122 : vector<8x128xi32>
    %124 = vector.shape_cast %113 : vector<8x1xf32> to vector<8x1xf32>
    %125 = vector.broadcast %124 : vector<8x1xf32> to vector<8x128xf32>
    %126 = arith.select %123, %125, %121 : vector<8x128xi1>, vector<8x128xf32>
    %c0_70 = arith.constant 0 : index
    %c0_71 = arith.constant 0 : index
    %127 = vector.load %arg25[%c0_70, %c0_71] : memref<8x128xf32, #tpu.memory_space<vmem>>, vector<8x128xf32>
    tpu.vector_store %arg25[%c0_70, %c0_71], %126 {strides = array<i32>} : memref<8x128xf32, #tpu.memory_space<vmem>>, vector<8x128xf32>,
    return
  }
}

</mosaic_0001>

<llo_original>
// kernel: forward_pallas.1
$region0: #{forward_pallas.1}
  #allocation0 [shape = 'u32[]', space=smem, size = 0x4, offset = 0x4, fixed_abs, tag = 'smem constant byte address 0x4 - core index']
  #allocation1 [shape = 'u32[72,128]{1,0:T(1,128)}', space=vmem, size = 0x9000, scoped, tag = 'internal scratch']
  #allocation2 [shape = 'f32[1,1]{1,0:T(1,128)S(1)}', space=vmem, size = 0x200, scoped, tag = 'scoped memory for forward_pallas.1']
  %s0 = inlined_call_operand.vmem [shape: f32[64,32], index: 0, kind: input, shape index: {}, may-alias: {0,23}]
  %s1 = inlined_call_operand.vmem [shape: f32[1,64], index: 1, kind: input, shape index: {}, may-alias: {1,24}]
  %s2 = inlined_call_operand.vmem [shape: s32[16,1], index: 2, kind: input, shape index: {}]
  %s3 = inlined_call_operand.vmem [shape: f32[16,1], index: 3, kind: input, shape index: {}]
  %s4 = inlined_call_operand.vmem [shape: f32[16,16], index: 4, kind: input, shape index: {}]
  %s5 = inlined_call_operand.vmem [shape: f32[8,12], index: 5, kind: input, shape index: {}]
  %s6 = inlined_call_operand.vmem [shape: f32[12,32], index: 6, kind: input, shape index: {}]
  %s7 = inlined_call_operand.vmem [shape: f32[1,32], index: 7, kind: input, shape index: {}]
  %s8 = inlined_call_operand.vmem [shape: f32[32,32], index: 8, kind: input, shape index: {}]
  %s9 = inlined_call_operand.vmem [shape: f32[1,32], index: 9, kind: input, shape index: {}]
  %s10 = inlined_call_operand.vmem [shape: f32[64,128], index: 10, kind: input, shape index: {}]
  %s11 = inlined_call_operand.vmem [shape: f32[1,128], index: 11, kind: input, shape index: {}]
  %s12 = inlined_call_operand.vmem [shape: f32[16,32], index: 12, kind: input, shape index: {}]
  %s13 = inlined_call_operand.vmem [shape: f32[1,32], index: 13, kind: input, shape index: {}]
  %s14 = inlined_call_operand.vmem [shape: f32[64,32], index: 14, kind: input, shape index: {}]
  %s15 = inlined_call_operand.vmem [shape: f32[1,32], index: 15, kind: input, shape index: {}]
  %s16 = inlined_call_operand.vmem [shape: f32[32,32], index: 16, kind: input, shape index: {}]
  %s17 = inlined_call_operand.vmem [shape: f32[1,32], index: 17, kind: input, shape index: {}]
  %s18 = inlined_call_operand.vmem [shape: f32[32,32], index: 18, kind: input, shape index: {}]
  %s19 = inlined_call_operand.vmem [shape: f32[32,32], index: 19, kind: input, shape index: {}]
  %s20 = inlined_call_operand.vmem [shape: f32[1,32], index: 20, kind: input, shape index: {}]
  %s21 = inlined_call_operand.vmem [shape: f32[32,1], index: 21, kind: input, shape index: {}]
  %s22 = inlined_call_operand.<no memory space> [shape: f32[1,1], index: 22, kind: input, shape index: {}]
  %s23 = inlined_call_operand.vmem [shape: f32[64,32], index: 23, kind: output, shape index: {0}, may-alias: {0,23}]
  %s24 = inlined_call_operand.vmem [shape: f32[1,64], index: 24, kind: output, shape index: {1}, may-alias: {1,24}]
  %s25 = inlined_call_operand.vmem [shape: f32[8,128], index: 25, kind: output, shape index: {2}]
  %26 = xla_tuple %s23, %s24, %s25
  %s27 = sld [smem:[#allocation0]]
  $region118: #{forward_pallas.1} parent=0
    _
  %s29 = ssub.s32 1, %s27
  %s30 = scalar_select 0, %s29, %s27
  %v31 = vstv %s22
  %32 = vst [vmem:[#allocation2] sm:$0x1] %v31
  // Predicated region
  $region2: #{forward_pallas.1} parent=0 // pred_check
    _
  $region3: #{forward_pallas.1} parent=0 // pred_check_branch
    %34 = sbr.rel (0) target = $region5
  $region4: #{forward_pallas.1} parent=0 // pred_region
    _
  $region5: #{forward_pallas.1} parent=0 // pred_fallthru
    _
  // Predicated region
  $region6: #{forward_pallas.1} parent=0 // pred_check
    _
  $region7: #{forward_pallas.1} parent=0 // pred_check_branch
    %36 = sbr.rel (0) target = $region9
  $region8: #{forward_pallas.1} parent=0 // pred_region
    _
  $region9: #{forward_pallas.1} parent=0 // pred_fallthru
    _
  // Predicated region
  $region10: #{forward_pallas.1} parent=0 // pred_check
    _
  $region11: #{forward_pallas.1} parent=0 // pred_check_branch
    %38 = sbr.rel (0) target = $region13
  $region12: #{forward_pallas.1} parent=0 // pred_region
    _
  $region13: #{forward_pallas.1} parent=0 // pred_fallthru
    _
  // Predicated region
  $region14: #{forward_pallas.1} parent=0 // pred_check
    _
  $region15: #{forward_pallas.1} parent=0 // pred_check_branch
    %40 = sbr.rel (0) target = $region17
  $region16: #{forward_pallas.1} parent=0 // pred_region
    _
  $region17: #{forward_pallas.1} parent=0 // pred_fallthru
    _
  // Predicated region
  $region18: #{forward_pallas.1} parent=0 // pred_check
    _
  $region19: #{forward_pallas.1} parent=0 // pred_check_branch
    %42 = sbr.rel (0) target = $region21
  $region20: #{forward_pallas.1} parent=0 // pred_region
    _
  $region21: #{forward_pallas.1} parent=0 // pred_fallthru
    _
  // Predicated region
  $region22: #{forward_pallas.1} parent=0 // pred_check
    _
  $region23: #{forward_pallas.1} parent=0 // pred_check_branch
    %44 = sbr.rel (0) target = $region25
  $region24: #{forward_pallas.1} parent=0 // pred_region
    _
  $region25: #{forward_pallas.1} parent=0 // pred_fallthru
    _
  // Predicated region
  $region26: #{forward_pallas.1} parent=0 // pred_check
    _
  $region27: #{forward_pallas.1} parent=0 // pred_check_branch
    %46 = sbr.rel (0) target = $region29
  $region28: #{forward_pallas.1} parent=0 // pred_region
    _
  $region29: #{forward_pallas.1} parent=0 // pred_fallthru
    _
  // Predicated region
  $region30: #{forward_pallas.1} parent=0 // pred_check
    _
  $region31: #{forward_pallas.1} parent=0 // pred_check_branch
    %48 = sbr.rel (0) target = $region33
  $region32: #{forward_pallas.1} parent=0 // pred_region
    _
  $region33: #{forward_pallas.1} parent=0 // pred_fallthru
    _
  // Predicated region
  $region34: #{forward_pallas.1} parent=0 // pred_check
    _
  $region35: #{forward_pallas.1} parent=0 // pred_check_branch
    %50 = sbr.rel (0) target = $region37
  $region36: #{forward_pallas.1} parent=0 // pred_region
    _
  $region37: #{forward_pallas.1} parent=0 // pred_fallthru
    _
  // Predicated region
  $region38: #{forward_pallas.1} parent=0 // pred_check
    _
  $region39: #{forward_pallas.1} parent=0 // pred_check_branch
    %52 = sbr.rel (0) target = $region41
  $region40: #{forward_pallas.1} parent=0 // pred_region
    _
  $region41: #{forward_pallas.1} parent=0 // pred_fallthru
    _
  // Predicated region
  $region42: #{forward_pallas.1} parent=0 // pred_check
    _
  $region43: #{forward_pallas.1} parent=0 // pred_check_branch
    %54 = sbr.rel (0) target = $region45
  $region44: #{forward_pallas.1} parent=0 // pred_region
    _
  $region45: #{forward_pallas.1} parent=0 // pred_fallthru
    _
  // Predicated region
  $region46: #{forward_pallas.1} parent=0 // pred_check
    _
  $region47: #{forward_pallas.1} parent=0 // pred_check_branch
    %56 = sbr.rel (0) target = $region49
  $region48: #{forward_pallas.1} parent=0 // pred_region
    _
  $region49: #{forward_pallas.1} parent=0 // pred_fallthru
    _
  // Predicated region
  $region50: #{forward_pallas.1} parent=0 // pred_check
    _
  $region51: #{forward_pallas.1} parent=0 // pred_check_branch
    %58 = sbr.rel (0) target = $region53
  $region52: #{forward_pallas.1} parent=0 // pred_region
    _
  $region53: #{forward_pallas.1} parent=0 // pred_fallthru
    _
  // Predicated region
  $region54: #{forward_pallas.1} parent=0 // pred_check
    _
  $region55: #{forward_pallas.1} parent=0 // pred_check_branch
    %60 = sbr.rel (0) target = $region57
  $region56: #{forward_pallas.1} parent=0 // pred_region
    _
  $region57: #{forward_pallas.1} parent=0 // pred_fallthru
    _
  // Predicated region
  $region58: #{forward_pallas.1} parent=0 // pred_check
    _
  $region59: #{forward_pallas.1} parent=0 // pred_check_branch
    %62 = sbr.rel (0) target = $region61
  $region60: #{forward_pallas.1} parent=0 // pred_region
    _
  $region61: #{forward_pallas.1} parent=0 // pred_fallthru
    _
  // Predicated region
  $region62: #{forward_pallas.1} parent=0 // pred_check
    _
  $region63: #{forward_pallas.1} parent=0 // pred_check_branch
    %64 = sbr.rel (0) target = $region65
  $region64: #{forward_pallas.1} parent=0 // pred_region
    _
  $region65: #{forward_pallas.1} parent=0 // pred_fallthru
    _
  // Predicated region
  $region66: #{forward_pallas.1} parent=0 // pred_check
    _
  $region67: #{forward_pallas.1} parent=0 // pred_check_branch
    %66 = sbr.rel (0) target = $region69
  $region68: #{forward_pallas.1} parent=0 // pred_region
    _
  $region69: #{forward_pallas.1} parent=0 // pred_fallthru
    _
  // Predicated region
  $region70: #{forward_pallas.1} parent=0 // pred_check
    _
  $region71: #{forward_pallas.1} parent=0 // pred_check_branch
    %68 = sbr.rel (0) target = $region73
  $region72: #{forward_pallas.1} parent=0 // pred_region
    _
  $region73: #{forward_pallas.1} parent=0 // pred_fallthru
    _
  // Predicated region
  $region74: #{forward_pallas.1} parent=0 // pred_check
    _
  $region75: #{forward_pallas.1} parent=0 // pred_check_branch
    %70 = sbr.rel (0) target = $region77
  $region76: #{forward_pallas.1} parent=0 // pred_region
    _
  $region77: #{forward_pallas.1} parent=0 // pred_fallthru
    _
  // Predicated region
  $region78: #{forward_pallas.1} parent=0 // pred_check
    _
  $region79: #{forward_pallas.1} parent=0 // pred_check_branch
    %72 = sbr.rel (0) target = $region81
  $region80: #{forward_pallas.1} parent=0 // pred_region
    _
  $region81: #{forward_pallas.1} parent=0 // pred_fallthru
    _
  // Predicated region
  $region82: #{forward_pallas.1} parent=0 // pred_check
    _
  $region83: #{forward_pallas.1} parent=0 // pred_check_branch
    %74 = sbr.rel (0) target = $region85
  $region84: #{forward_pallas.1} parent=0 // pred_region
    _
  $region85: #{forward_pallas.1} parent=0 // pred_fallthru
    _
  // Predicated region
  $region86: #{forward_pallas.1} parent=0 // pred_check
    _
  $region87: #{forward_pallas.1} parent=0 // pred_check_branch
    %76 = sbr.rel (0) target = $region89
  $region88: #{forward_pallas.1} parent=0 // pred_region
    _
  $region89: #{forward_pallas.1} parent=0 // pred_fallthru
    _
  // Predicated region
  $region90: #{forward_pallas.1} parent=0 // pred_check
    _
  $region91: #{forward_pallas.1} parent=0 // pred_check_branch
    %78 = sbr.rel (0) target = $region93
  $region92: #{forward_pallas.1} parent=0 // pred_region
    _
  $region93: #{forward_pallas.1} parent=0 // pred_fallthru
    _
  %v79 = vlaneseq
  %v80 = vand.u32 %v79, 127
  %v81 = vld [vmem:[%s2] sm:$0xff]
  %v82 = vld [vmem:[%s2 + $0x8] sm:$0xff]
  %83 = vset.pattern.permute.xlu0 0
  %84 = vperm.xlu0 %83, %v81
  %v85 = vpop.permute.xlu0 %84
  %86 = vset.pattern.permute.xlu0 0
  %87 = vperm.xlu0 %86, %v82
  %v88 = vpop.permute.xlu0 %87
  %vm89 = vcmp.eq.s32.totalorder %v80, %v85
  %vm90 = vcmp.eq.s32.totalorder %v80, %v88
  %v91 = vsel %vm89, 1, 0
  %v92 = vsel %vm90, 1, 0
  %v93 = vcvt.s32.f32 %v91
  %v94 = vcvt.s32.f32 %v92
  %v95 = vld [vmem:[%s5] sm:$0xff]
  %v96 = vld [vmem:[%s6] sm:$0xff]
  %v97 = vld [vmem:[%s6 + $0x8] sm:$0xf]
  %v98 = vld [vmem:[%s7] sm:$0x1]
  %v100 = vperm.slane %v98, 0
  %vm102 = vcmask 97280
  %v104 = vsel %vm102, %v95, 0
  %vm106 = vcmask 1043456
  %v108 = vsel %vm106, %v97, 0
  %110 = vmatpush.msra.mxu0 0.0
  %111 = vmatpush.msra.mxu0 0.0
  %112 = vmatpush.msra.mxu0 0.0
  %113 = vmatpush.msra.mxu0 0.0
  %114 = vmatpush.msra.mxu0 0.0
  %115 = vmatpush.msra.mxu0 0.0
  %116 = vmatpush.msra.mxu0 0.0
  %117 = vmatpush.msra.mxu0 0.0
  %118 = vmatpush.msra.mxu0 0.0
  %119 = vmatpush.msra.mxu0 0.0
  %120 = vmatpush.msra.mxu0 0.0
  %121 = vmatpush.msra.mxu0 0.0
  %122 = vmatpush.msra.mxu0 0.0
  %123 = vmatpush.msra.mxu0 0.0
  %124 = vmatpush.msra.mxu0 %v108
  %125 = vmatpush.msra.mxu0 %v96
  %126 = vmatmul.f32.gmra.mxu0 %v104
  %v127 = vpop.f32.mrf.mxu0
  %v128 = vadd.f32 %v100, %v127
  %129 = vdwg.mxu0
  %v130 = vmax.f32 %v128, 0.0
  %v131 = vld [vmem:[%s8] sm:$0xff]
  %v132 = vld [vmem:[%s8 + $0x8] sm:$0xff]
  %v133 = vld [vmem:[%s8 + $0x10] sm:$0xff]
  %v134 = vld [vmem:[%s8 + $0x18] sm:$0xff]
  %v135 = vld [vmem:[%s9] sm:$0x1]
  %v137 = vperm.slane %v135, 0
  %vm139 = vcmask 261120
  %v141 = vsel %vm139, %v130, 0
  %143 = vmatpush.msra.mxu0 0.0
  %144 = vmatpush.msra.mxu0 0.0
  %145 = vmatpush.msra.mxu0 0.0
  %146 = vmatpush.msra.mxu0 0.0
  %147 = vmatpush.msra.mxu0 0.0
  %148 = vmatpush.msra.mxu0 0.0
  %149 = vmatpush.msra.mxu0 0.0
  %150 = vmatpush.msra.mxu0 0.0
  %151 = vmatpush.msra.mxu0 0.0
  %152 = vmatpush.msra.mxu0 0.0
  %153 = vmatpush.msra.mxu0 0.0
  %154 = vmatpush.msra.mxu0 0.0
  %155 = vmatpush.msra.mxu0 %v134
  %156 = vmatpush.msra.mxu0 %v133
  %157 = vmatpush.msra.mxu0 %v132
  %158 = vmatpush.msra.mxu0 %v131
  %159 = vmatmul.f32.gmra.mxu0 %v141
  %v160 = vpop.f32.mrf.mxu0
  %v161 = vadd.f32 %v137, %v160
  %162 = vdwg.mxu0
  %v163 = vld [vmem:[%s0] sm:$0xff]
  %v164 = vld [vmem:[%s0 + $0x8] sm:$0xff]
  %v165 = vld [vmem:[%s0 + $0x10] sm:$0xff]
  %v166 = vld [vmem:[%s0 + $0x18] sm:$0xff]
  %v167 = vld [vmem:[%s0 + $0x20] sm:$0xff]
  %v168 = vld [vmem:[%s0 + $0x28] sm:$0xff]
  %v169 = vld [vmem:[%s0 + $0x30] sm:$0xff]
  %v170 = vld [vmem:[%s0 + $0x38] sm:$0xff]
  %v171 = vld [vmem:[%s1] sm:$0x1]
  %vm172 = vcmask 523264
  %v174 = vsel %vm172, %v93, 0
  %v177 = vsel %vm172, %v94, 0
  %179 = vmatpush.msra.mxu0 0.0
  %180 = vmatpush.msra.mxu0 0.0
  %181 = vmatpush.msra.mxu0 0.0
  %182 = vmatpush.msra.mxu0 0.0
  %183 = vmatpush.msra.mxu0 0.0
  %184 = vmatpush.msra.mxu0 0.0
  %185 = vmatpush.msra.mxu0 0.0
  %186 = vmatpush.msra.mxu0 0.0
  %187 = vmatpush.msra.mxu0 %v170
  %188 = vmatpush.msra.mxu0 %v169
  %189 = vmatpush.msra.mxu0 %v168
  %190 = vmatpush.msra.mxu0 %v167
  %191 = vmatpush.msra.mxu0 %v166
  %192 = vmatpush.msra.mxu0 %v165
  %193 = vmatpush.msra.mxu0 %v164
  %194 = vmatpush.msra.mxu0 %v163
  %195 = vmatmul.f32.gmra.mxu0 %v174
  %v196 = vpop.f32.mrf.mxu0
  %v197 = vadd.f32 0.0, %v196
  %198 = vmatmul.f32.gmra.mxu0 %v177
  %v199 = vpop.f32.mrf.mxu0
  %v200 = vadd.f32 0.0, %v199
  %201 = vdwg.mxu0
  %v203 = vperm.slane %v171, 0
  %v205 = vmul.f32 %v93, %v203
  %v206 = vmul.f32 %v94, %v203
  %v207 = vsel %vm172, %v205, 0.0
  %208 = vadd.xlane.f32.xlu0 %v207
  %v209 = vpop.xlane.xlu0 %208
  %v210 = vsel %vm172, %v206, 0.0
  %211 = vadd.xlane.f32.xlu0 %v210
  %v212 = vpop.xlane.xlu0 %211
  %v213 = vld [vmem:[%s3] sm:$0xff]
  %v214 = vld [vmem:[%s3 + $0x8] sm:$0xff]
  %v215 = vsub.f32 %v213, %v209
  %v216 = vsub.f32 %v214, %v212
  %v217 = vmax.f32 %v215, 0.0
  %v218 = vmax.f32 %v216, 0.0
  %v219 = vmul.f32 %v217, -0.1
  %v220 = vmul.f32 %v218, -0.1
  %v221 = vmul.f32 %v219, 1.442695
  %v222 = vpow.pop %v221
  %v223 = vmul.f32 %v220, 1.442695
  %v224 = vpow.pop %v223
  %226 = vset.pattern.permute.xlu0 0
  %227 = vperm.xlu0 %226, %v222
  %v228 = vpop.permute.xlu0 %227
  %231 = vset.pattern.permute.xlu0 0
  %232 = vperm.xlu0 %231, %v224
  %v233 = vpop.permute.xlu0 %232
  %v235 = vmul.f32 %v197, %v228
  %v236 = vmul.f32 %v200, %v233
  %239 = vrot.lane.b32.xlu0 %v235, 32
  %v240 = vpop.permute.xlu0 %239
  %241 = vrot.lane.b32.xlu0 %v236, 32
  %v242 = vpop.permute.xlu0 %241
  %v245 = vsel %vm139, %v161, %v240
  %v246 = vsel %vm139, %v161, %v242
  %v247 = vld [vmem:[%s10] sm:$0xff]
  %v248 = vld [vmem:[%s10 + $0x8] sm:$0xff]
  %v249 = vld [vmem:[%s10 + $0x10] sm:$0xff]
  %v250 = vld [vmem:[%s10 + $0x18] sm:$0xff]
  %v251 = vld [vmem:[%s10 + $0x20] sm:$0xff]
  %v252 = vld [vmem:[%s10 + $0x28] sm:$0xff]
  %v253 = vld [vmem:[%s10 + $0x30] sm:$0xff]
  %v254 = vld [vmem:[%s10 + $0x38] sm:$0xff]
  %v255 = vld [vmem:[%s11] sm:$0x1]
  %v257 = vperm.slane %v255, 0
  %v260 = vsel %vm172, %v245, 0
  %v263 = vsel %vm172, %v246, 0
  %265 = vmatpush.msra.mxu0 0.0
  %266 = vmatpush.msra.mxu0 0.0
  %267 = vmatpush.msra.mxu0 0.0
  %268 = vmatpush.msra.mxu0 0.0
  %269 = vmatpush.msra.mxu0 0.0
  %270 = vmatpush.msra.mxu0 0.0
  %271 = vmatpush.msra.mxu0 0.0
  %272 = vmatpush.msra.mxu0 0.0
  %273 = vmatpush.msra.mxu0 %v254
  %274 = vmatpush.msra.mxu0 %v253
  %275 = vmatpush.msra.mxu0 %v252
  %276 = vmatpush.msra.mxu0 %v251
  %277 = vmatpush.msra.mxu0 %v250
  %278 = vmatpush.msra.mxu0 %v249
  %279 = vmatpush.msra.mxu0 %v248
  %280 = vmatpush.msra.mxu0 %v247
  %281 = vmatmul.f32.gmra.mxu0 %v260
  %v282 = vpop.f32.mrf.mxu0
  %v283 = vadd.f32 %v257, %v282
  %284 = vmatmul.f32.gmra.mxu0 %v263
  %v285 = vpop.f32.mrf.mxu0
  %v286 = vadd.f32 %v257, %v285
  %287 = vdwg.mxu0
  %v288 = vxor.u32 %v283, 2147483648
  %v289 = vxor.u32 %v286, 2147483648
  %v290 = vmul.f32 %v288, 1.442695
  %v291 = vpow.pop %v290
  %v292 = vmul.f32 %v289, 1.442695
  %v293 = vpow.pop %v292
  %v294 = vadd.f32 %v291, 1.0
  %v295 = vadd.f32 %v293, 1.0
  %v296 = vrcp.pop %v294
  %v297 = vmul.f32 %v294, %v296
  %v298 = vsub.f32 1.0, %v297
  %v299 = vmul.f32 %v296, %v298
  %v300 = vadd.f32 %v296, %v299
  %vm301 = vweird.f32 %v294
  %vm302 = vweird.f32 %v296
  %vm303 = vmor %vm301, %vm302
  %v304 = vsel %vm303, %v296, %v300
  %v305 = vand.u32 2147483647, %v294
  %vm306 = vcmp.eq.f32.partialorder %v305, 8.507059e+37
  %v307 = vand.u32 %v294, 2147483648
  %v308 = vor.u32 1.1754944e-38, %v307
  %v309 = vsel %vm306, %v308, %v304
  %v310 = vmul.f32 1.0, %v309
  %v311 = vrcp.pop %v295
  %v312 = vmul.f32 %v295, %v311
  %v313 = vsub.f32 1.0, %v312
  %v314 = vmul.f32 %v311, %v313
  %v315 = vadd.f32 %v311, %v314
  %vm316 = vweird.f32 %v295
  %vm317 = vweird.f32 %v311
  %vm318 = vmor %vm316, %vm317
  %v319 = vsel %vm318, %v311, %v315
  %v320 = vand.u32 2147483647, %v295
  %vm321 = vcmp.eq.f32.partialorder %v320, 8.507059e+37
  %v322 = vand.u32 %v295, 2147483648
  %v323 = vor.u32 1.1754944e-38, %v322
  %v324 = vsel %vm321, %v323, %v319
  %v325 = vmul.f32 1.0, %v324
  %v326 = vsub.f32 %v310, 1.0
  %v327 = vsub.f32 %v325, 1.0
  %330 = vrot.lane.b32.xlu0 %v283, 32
  %v331 = vpop.permute.xlu0 %330
  %332 = vrot.lane.b32.xlu0 %v286, 32
  %v333 = vpop.permute.xlu0 %332
  %v336 = vmul.f32 %v326, %v331
  %v337 = vmul.f32 %v327, %v333
  %340 = vrot.lane.b32.xlu0 %v336, 64
  %v341 = vpop.permute.xlu0 %340
  %342 = vrot.lane.b32.xlu0 %v337, 64
  %v343 = vpop.permute.xlu0 %342
  %v346 = vadd.f32 %v283, %v341
  %v347 = vadd.f32 %v286, %v343
  %v348 = vtanh.pop %v346
  %v349 = vtanh.pop %v347
  %v350 = vsub.f32 1.0, %v310
  %v351 = vsub.f32 1.0, %v325
  %354 = vrot.lane.b32.xlu0 %v348, 96
  %v355 = vpop.permute.xlu0 %354
  %356 = vrot.lane.b32.xlu0 %v349, 96
  %v357 = vpop.permute.xlu0 %356
  %v360 = vmul.f32 %v350, %v355
  %v361 = vmul.f32 %v351, %v357
  %v362 = vmul.f32 %v310, %v240
  %v363 = vmul.f32 %v325, %v242
  %v364 = vadd.f32 %v360, %v362
  %v365 = vadd.f32 %v361, %v363
  %368 = vrot.lane.b32.xlu0 %v197, 32
  %v369 = vpop.permute.xlu0 %368
  %370 = vrot.lane.b32.xlu0 %v200, 32
  %v371 = vpop.permute.xlu0 %370
  %v374 = vsub.f32 %v364, %v369
  %v375 = vsub.f32 %v365, %v371
  %376 = vxpose.xlu0.b32.start [1/16] %v93, 128
  %377 = vxpose.xlu0.b32.cont [2/16] %v94, 128
  %378 = vxpose.xlu0.b32.cont [3/16] 0.0, 128
  %379 = vxpose.xlu0.b32.cont [4/16] 0.0, 128
  %380 = vxpose.xlu0.b32.cont [5/16] 0.0, 128
  %381 = vxpose.xlu0.b32.cont [6/16] 0.0, 128
  %382 = vxpose.xlu0.b32.cont [7/16] 0.0, 128
  %383 = vxpose.xlu0.b32.cont [8/16] 0.0, 128
  %384 = vxpose.xlu0.b32.cont [9/16] 0.0, 128
  %385 = vxpose.xlu0.b32.cont [10/16] 0.0, 128
  %386 = vxpose.xlu0.b32.cont [11/16] 0.0, 128
  %387 = vxpose.xlu0.b32.cont [12/16] 0.0, 128
  %388 = vxpose.xlu0.b32.cont [13/16] 0.0, 128
  %389 = vxpose.xlu0.b32.cont [14/16] 0.0, 128
  %390 = vxpose.xlu0.b32.cont [15/16] 0.0, 128
  %391 = vxpose.xlu0.b32.end [16/16] 0.0, 128
  %v392 = vpop.trf.xlu0
  %v393 = vpop.trf.xlu0
  %v394 = vpop.trf.xlu0
  %v395 = vpop.trf.xlu0
  %v396 = vpop.trf.xlu0
  %v397 = vpop.trf.xlu0
  %v398 = vpop.trf.xlu0
  %v399 = vpop.trf.xlu0
  %v400 = vpop.trf.xlu0
  %v401 = vpop.trf.xlu0
  %v402 = vpop.trf.xlu0
  %v403 = vpop.trf.xlu0
  %v404 = vpop.trf.xlu0
  %v405 = vpop.trf.xlu0
  %v406 = vpop.trf.xlu0
  %v407 = vpop.trf.xlu0
  %410 = vrot.lane.b32.xlu0 %v374, 96
  %v411 = vpop.permute.xlu0 %410
  %412 = vrot.lane.b32.xlu0 %v375, 96
  %v413 = vpop.permute.xlu0 %412
  %vm416 = vcmask 130048
  %v418 = vsel %vm416, %v392, 0
  %v421 = vsel %vm416, %v393, 0
  %v424 = vsel %vm416, %v394, 0
  %v427 = vsel %vm416, %v395, 0
  %v430 = vsel %vm416, %v396, 0
  %v433 = vsel %vm416, %v397, 0
  %v436 = vsel %vm416, %v398, 0
  %v439 = vsel %vm416, %v399, 0
  %441 = vmatpush.msra.mxu0 0.0
  %442 = vmatpush.msra.mxu0 0.0
  %443 = vmatpush.msra.mxu0 0.0
  %444 = vmatpush.msra.mxu0 0.0
  %445 = vmatpush.msra.mxu0 0.0
  %446 = vmatpush.msra.mxu0 0.0
  %447 = vmatpush.msra.mxu0 0.0
  %448 = vmatpush.msra.mxu0 0.0
  %449 = vmatpush.msra.mxu0 0.0
  %450 = vmatpush.msra.mxu0 0.0
  %451 = vmatpush.msra.mxu0 0.0
  %452 = vmatpush.msra.mxu0 0.0
  %453 = vmatpush.msra.mxu0 0.0
  %454 = vmatpush.msra.mxu0 0.0
  %455 = vmatpush.msra.mxu0 %v413
  %456 = vmatpush.msra.mxu0 %v411
  %457 = vmatmul.f32.gmra.mxu0 %v418
  %v458 = vpop.f32.mrf.mxu0
  %v459 = vadd.f32 0.0, %v458
  %460 = vmatmul.f32.gmra.mxu0 %v421
  %v461 = vpop.f32.mrf.mxu0
  %v462 = vadd.f32 0.0, %v461
  %463 = vmatmul.f32.gmra.mxu0 %v424
  %v464 = vpop.f32.mrf.mxu0
  %v465 = vadd.f32 0.0, %v464
  %466 = vmatmul.f32.gmra.mxu0 %v427
  %v467 = vpop.f32.mrf.mxu0
  %v468 = vadd.f32 0.0, %v467
  %469 = vmatmul.f32.gmra.mxu0 %v430
  %v470 = vpop.f32.mrf.mxu0
  %v471 = vadd.f32 0.0, %v470
  %472 = vmatmul.f32.gmra.mxu0 %v433
  %v473 = vpop.f32.mrf.mxu0
  %v474 = vadd.f32 0.0, %v473
  %475 = vmatmul.f32.gmra.mxu0 %v436
  %v476 = vpop.f32.mrf.mxu0
  %v477 = vadd.f32 0.0, %v476
  %478 = vmatmul.f32.gmra.mxu0 %v439
  %v479 = vpop.f32.mrf.mxu0
  %v480 = vadd.f32 0.0, %v479
  %481 = vdwg.mxu0
  %v482 = vadd.f32 %v163, %v459
  %v483 = vadd.f32 %v164, %v462
  %v484 = vadd.f32 %v165, %v465
  %v485 = vadd.f32 %v166, %v468
  %v486 = vadd.f32 %v167, %v471
  %v487 = vadd.f32 %v168, %v474
  %v488 = vadd.f32 %v169, %v477
  %v489 = vadd.f32 %v170, %v480
  %490 = vst.msk [vmem:[%s23] sm:$0xff] %vm139, %v482
  %491 = vst.msk [vmem:[%s23 + $0x8] sm:$0xff] %vm139, %v483
  %492 = vst.msk [vmem:[%s23 + $0x10] sm:$0xff] %vm139, %v484
  %493 = vst.msk [vmem:[%s23 + $0x18] sm:$0xff] %vm139, %v485
  %494 = vst.msk [vmem:[%s23 + $0x20] sm:$0xff] %vm139, %v486
  %495 = vst.msk [vmem:[%s23 + $0x28] sm:$0xff] %vm139, %v487
  %496 = vst.msk [vmem:[%s23 + $0x30] sm:$0xff] %vm139, %v488
  %497 = vst.msk [vmem:[%s23 + $0x38] sm:$0xff] %vm139, %v489
  %499 = vset.pattern.permute.xlu0 0
  %500 = vperm.xlu0 %499, %v215
  %v501 = vpop.permute.xlu0 %500
  %504 = vset.pattern.permute.xlu0 0
  %505 = vperm.xlu0 %504, %v216
  %v506 = vpop.permute.xlu0 %505
  %v508 = vmul.f32 %v93, %v501
  %v509 = vmul.f32 %v94, %v506
  %v510 = vsel %vm172, %v508, 0.0
  %v511 = vsel %vm172, %v509, 0.0
  %v512 = vadd.f32 %v510, %v511
  %v513 = vrot.slane %v512, 4
  %v514 = vadd.f32 %v512, %v513
  %v515 = vrot.slane %v514, 2
  %v516 = vadd.f32 %v514, %v515
  %v517 = vrot.slane %v516, 1
  %v518 = vadd.f32 %v516, %v517
  %v519 = vadd.f32 %v171, %v518
  %vm520 = vcmask 516096
  %521 = vst.msk [vmem:[%s24] sm:$0x1] %vm520, %v519
  %v522 = vld [vmem:[%s4] sm:$0xff]
  %v523 = vld [vmem:[%s4 + $0x8] sm:$0xff]
  %v524 = vld [vmem:[%s12] sm:$0xff]
  %v525 = vld [vmem:[%s12 + $0x8] sm:$0xff]
  %v526 = vld [vmem:[%s13] sm:$0x1]
  %v528 = vperm.slane %v526, 0
  %v531 = vsel %vm416, %v522, 0
  %v534 = vsel %vm416, %v523, 0
  %536 = vmatpush.msra.mxu0 0.0
  %537 = vmatpush.msra.mxu0 0.0
  %538 = vmatpush.msra.mxu0 0.0
  %539 = vmatpush.msra.mxu0 0.0
  %540 = vmatpush.msra.mxu0 0.0
  %541 = vmatpush.msra.mxu0 0.0
  %542 = vmatpush.msra.mxu0 0.0
  %543 = vmatpush.msra.mxu0 0.0
  %544 = vmatpush.msra.mxu0 0.0
  %545 = vmatpush.msra.mxu0 0.0
  %546 = vmatpush.msra.mxu0 0.0
  %547 = vmatpush.msra.mxu0 0.0
  %548 = vmatpush.msra.mxu0 0.0
  %549 = vmatpush.msra.mxu0 0.0
  %550 = vmatpush.msra.mxu0 %v525
  %551 = vmatpush.msra.mxu0 %v524
  %552 = vmatmul.f32.gmra.mxu0 %v531
  %v553 = vpop.f32.mrf.mxu0
  %v554 = vadd.f32 %v528, %v553
  %555 = vmatmul.f32.gmra.mxu0 %v534
  %v556 = vpop.f32.mrf.mxu0
  %v557 = vadd.f32 %v528, %v556
  %558 = vdwg.mxu0
  %561 = vrot.lane.b32.xlu0 %v364, 96
  %v562 = vpop.permute.xlu0 %561
  %563 = vrot.lane.b32.xlu0 %v365, 96
  %v564 = vpop.permute.xlu0 %563
  %569 = vrot.lane.b32.xlu0 %v554, 32
  %v570 = vpop.permute.xlu0 %569
  %571 = vrot.lane.b32.xlu0 %v557, 32
  %v572 = vpop.permute.xlu0 %571
  %v575 = vsel %vm139, %v562, %v570
  %v576 = vsel %vm139, %v564, %v572
  %v577 = vld [vmem:[%s14] sm:$0xff]
  %v578 = vld [vmem:[%s14 + $0x8] sm:$0xff]
  %v579 = vld [vmem:[%s14 + $0x10] sm:$0xff]
  %v580 = vld [vmem:[%s14 + $0x18] sm:$0xff]
  %v581 = vld [vmem:[%s14 + $0x20] sm:$0xff]
  %v582 = vld [vmem:[%s14 + $0x28] sm:$0xff]
  %v583 = vld [vmem:[%s14 + $0x30] sm:$0xff]
  %v584 = vld [vmem:[%s14 + $0x38] sm:$0xff]
  %v585 = vld [vmem:[%s15] sm:$0x1]
  %v587 = vperm.slane %v585, 0
  %v590 = vsel %vm172, %v575, 0
  %v593 = vsel %vm172, %v576, 0
  %595 = vmatpush.msra.mxu0 0.0
  %596 = vmatpush.msra.mxu0 0.0
  %597 = vmatpush.msra.mxu0 0.0
  %598 = vmatpush.msra.mxu0 0.0
  %599 = vmatpush.msra.mxu0 0.0
  %600 = vmatpush.msra.mxu0 0.0
  %601 = vmatpush.msra.mxu0 0.0
  %602 = vmatpush.msra.mxu0 0.0
  %603 = vmatpush.msra.mxu0 %v584
  %604 = vmatpush.msra.mxu0 %v583
  %605 = vmatpush.msra.mxu0 %v582
  %606 = vmatpush.msra.mxu0 %v581
  %607 = vmatpush.msra.mxu0 %v580
  %608 = vmatpush.msra.mxu0 %v579
  %609 = vmatpush.msra.mxu0 %v578
  %610 = vmatpush.msra.mxu0 %v577
  %611 = vmatmul.f32.gmra.mxu0 %v590
  %v612 = vpop.f32.mrf.mxu0
  %v613 = vadd.f32 %v587, %v612
  %614 = vmatmul.f32.gmra.mxu0 %v593
  %v615 = vpop.f32.mrf.mxu0
  %v616 = vadd.f32 %v587, %v615
  %617 = vdwg.mxu0
  %v618 = vmax.f32 %v613, 0.0
  %v619 = vmax.f32 %v616, 0.0
  %v620 = vld [vmem:[%s16] sm:$0xff]
  %v621 = vld [vmem:[%s16 + $0x8] sm:$0xff]
  %v622 = vld [vmem:[%s16 + $0x10] sm:$0xff]
  %v623 = vld [vmem:[%s16 + $0x18] sm:$0xff]
  %v624 = vld [vmem:[%s17] sm:$0x1]
  %v626 = vperm.slane %v624, 0
  %v629 = vsel %vm139, %v618, 0
  %v632 = vsel %vm139, %v619, 0
  %634 = vmatpush.msra.mxu0 0.0
  %635 = vmatpush.msra.mxu0 0.0
  %636 = vmatpush.msra.mxu0 0.0
  %637 = vmatpush.msra.mxu0 0.0
  %638 = vmatpush.msra.mxu0 0.0
  %639 = vmatpush.msra.mxu0 0.0
  %640 = vmatpush.msra.mxu0 0.0
  %641 = vmatpush.msra.mxu0 0.0
  %642 = vmatpush.msra.mxu0 0.0
  %643 = vmatpush.msra.mxu0 0.0
  %644 = vmatpush.msra.mxu0 0.0
  %645 = vmatpush.msra.mxu0 0.0
  %646 = vmatpush.msra.mxu0 %v623
  %647 = vmatpush.msra.mxu0 %v622
  %648 = vmatpush.msra.mxu0 %v621
  %649 = vmatpush.msra.mxu0 %v620
  %650 = vmatmul.f32.gmra.mxu0 %v629
  %v651 = vpop.f32.mrf.mxu0
  %v652 = vadd.f32 %v626, %v651
  %653 = vmatmul.f32.gmra.mxu0 %v632
  %v654 = vpop.f32.mrf.mxu0
  %v655 = vadd.f32 %v626, %v654
  %656 = vdwg.mxu0
  %v657 = vld [vmem:[%s18] sm:$0xff]
  %v658 = vld [vmem:[%s18 + $0x8] sm:$0xff]
  %v659 = vld [vmem:[%s18 + $0x10] sm:$0xff]
  %v660 = vld [vmem:[%s18 + $0x18] sm:$0xff]
  %v661 = vld [vmem:[%s19] sm:$0xff]
  %v662 = vld [vmem:[%s19 + $0x8] sm:$0xff]
  %v663 = vld [vmem:[%s19 + $0x10] sm:$0xff]
  %v664 = vld [vmem:[%s19 + $0x18] sm:$0xff]
  %v666 = vsel %vm139, %v655, 0
  %668 = vmatpush.msra.mxu0 0.0
  %669 = vmatpush.msra.mxu0 0.0
  %670 = vmatpush.msra.mxu0 0.0
  %671 = vmatpush.msra.mxu0 0.0
  %672 = vmatpush.msra.mxu0 0.0
  %673 = vmatpush.msra.mxu0 0.0
  %674 = vmatpush.msra.mxu0 0.0
  %675 = vmatpush.msra.mxu0 0.0
  %676 = vmatpush.msra.mxu0 0.0
  %677 = vmatpush.msra.mxu0 0.0
  %678 = vmatpush.msra.mxu0 0.0
  %679 = vmatpush.msra.mxu0 0.0
  %680 = vmatpush.msra.mxu0 %v664
  %681 = vmatpush.msra.mxu0 %v663
  %682 = vmatpush.msra.mxu0 %v662
  %683 = vmatpush.msra.mxu0 %v661
  %684 = vmatmul.f32.gmra.mxu0 %v666
  %v685 = vpop.f32.mrf.mxu0
  %v686 = vadd.f32 0.0, %v685
  %687 = vdwg.mxu0
  %v689 = vsel %vm139, %v652, 0
  %691 = vmatpush.msra.mxu0 0.0
  %692 = vmatpush.msra.mxu0 0.0
  %693 = vmatpush.msra.mxu0 0.0
  %694 = vmatpush.msra.mxu0 0.0
  %695 = vmatpush.msra.mxu0 0.0
  %696 = vmatpush.msra.mxu0 0.0
  %697 = vmatpush.msra.mxu0 0.0
  %698 = vmatpush.msra.mxu0 0.0
  %699 = vmatpush.msra.mxu0 0.0
  %700 = vmatpush.msra.mxu0 0.0
  %701 = vmatpush.msra.mxu0 0.0
  %702 = vmatpush.msra.mxu0 0.0
  %703 = vmatpush.msra.mxu0 %v660
  %704 = vmatpush.msra.mxu0 %v659
  %705 = vmatpush.msra.mxu0 %v658
  %706 = vmatpush.msra.mxu0 %v657
  %707 = vmatmul.f32.gmra.mxu0 %v689
  %v708 = vpop.f32.mrf.mxu0
  %v709 = vadd.f32 %v686, %v708
  %710 = vdwg.mxu0
  %v711 = vld [vmem:[%s20] sm:$0x1]
  %v713 = vperm.slane %v711, 0
  %v715 = vadd.f32 %v709, %v713
  %v716 = vmax.f32 %v715, 0.0
  %v717 = vld [vmem:[%s21] sm:$0xff]
  %v718 = vld [vmem:[%s21 + $0x8] sm:$0xff]
  %v719 = vld [vmem:[%s21 + $0x10] sm:$0xff]
  %v720 = vld [vmem:[%s21 + $0x18] sm:$0xff]
  %v721 = vld [vmem:[#allocation2] sm:$0x1]
  %v723 = vperm.slane %v721, 0
  %v726 = vsel %vm139, %v716, 0
  %728 = vmatpush.msra.mxu0 0.0
  %729 = vmatpush.msra.mxu0 0.0
  %730 = vmatpush.msra.mxu0 0.0
  %731 = vmatpush.msra.mxu0 0.0
  %732 = vmatpush.msra.mxu0 0.0
  %733 = vmatpush.msra.mxu0 0.0
  %734 = vmatpush.msra.mxu0 0.0
  %735 = vmatpush.msra.mxu0 0.0
  %736 = vmatpush.msra.mxu0 0.0
  %737 = vmatpush.msra.mxu0 0.0
  %738 = vmatpush.msra.mxu0 0.0
  %739 = vmatpush.msra.mxu0 0.0
  %740 = vmatpush.msra.mxu0 %v720
  %741 = vmatpush.msra.mxu0 %v719
  %742 = vmatpush.msra.mxu0 %v718
  %743 = vmatpush.msra.mxu0 %v717
  %744 = vmatmul.f32.gmra.mxu0 %v726
  %v745 = vpop.f32.mrf.mxu0
  %v746 = vadd.f32 %v723, %v745
  %747 = vdwg.mxu0
  %v748 = vxor.u32 %v746, 2147483648
  %v749 = vmul.f32 %v748, 1.442695
  %v750 = vpow.pop %v749
  %v751 = vadd.f32 %v750, 1.0
  %v752 = vrcp.pop %v751
  %v753 = vmul.f32 %v751, %v752
  %v754 = vsub.f32 1.0, %v753
  %v755 = vmul.f32 %v752, %v754
  %v756 = vadd.f32 %v752, %v755
  %vm757 = vweird.f32 %v751
  %vm758 = vweird.f32 %v752
  %vm759 = vmor %vm757, %vm758
  %v760 = vsel %vm759, %v752, %v756
  %v761 = vand.u32 2147483647, %v751
  %vm762 = vcmp.eq.f32.partialorder %v761, 8.507059e+37
  %v763 = vand.u32 %v751, 2147483648
  %v764 = vor.u32 1.1754944e-38, %v763
  %v765 = vsel %vm762, %v764, %v760
  %v766 = vmul.f32 1.0, %v765
  %vm767 = vcmp.eq.s32.totalorder %v80, 1
  %vm768 = vcmp.eq.s32.totalorder %v80, 2
  %vm769 = vmor %vm767, %vm768
  %v770 = vsel %vm769, 1, 0
  %v771 = vcvt.s32.f32 %v770
  %vm772 = vcmp.eq.s32.totalorder %v80, 0
  %774 = vset.pattern.permute.xlu0 0
  %775 = vperm.xlu0 %774, %v766
  %v776 = vpop.permute.xlu0 %775
  %v778 = vsel %vm772, %v776, %v771
  %779 = vst [vmem:[%s25] sm:$0xff] %v778
  // Predicated region
  $region94: #{forward_pallas.1} parent=0 // pred_check
    _
  $region95: #{forward_pallas.1} parent=0 // pred_check_branch
    %781 = sbr.rel (0) target = $region97
  $region96: #{forward_pallas.1} parent=0 // pred_region
    _
  $region97: #{forward_pallas.1} parent=0 // pred_fallthru
    _
  // Predicated region
  $region98: #{forward_pallas.1} parent=0 // pred_check
    _
  $region99: #{forward_pallas.1} parent=0 // pred_check_branch
    %783 = sbr.rel (0) target = $region101
  $region100: #{forward_pallas.1} parent=0 // pred_region
    _
  $region101: #{forward_pallas.1} parent=0 // pred_fallthru
    _
  // Predicated region
  $region102: #{forward_pallas.1} parent=0 // pred_check
    _
  $region103: #{forward_pallas.1} parent=0 // pred_check_branch
    %785 = sbr.rel (0) target = $region105
  $region104: #{forward_pallas.1} parent=0 // pred_region
    _
  $region105: #{forward_pallas.1} parent=0 // pred_fallthru
    _
  // Predicated region
  $region106: #{forward_pallas.1} parent=0 // pred_check
    _
  $region107: #{forward_pallas.1} parent=0 // pred_check_branch
    %787 = sbr.rel (0) target = $region109
  $region108: #{forward_pallas.1} parent=0 // pred_region
    _
  $region109: #{forward_pallas.1} parent=0 // pred_fallthru
    _
  // Predicated region
  $region110: #{forward_pallas.1} parent=0 // pred_check
    _
  $region111: #{forward_pallas.1} parent=0 // pred_check_branch
    %789 = sbr.rel (0) target = $region113
  $region112: #{forward_pallas.1} parent=0 // pred_region
    _
  $region113: #{forward_pallas.1} parent=0 // pred_fallthru
    _
  // Predicated region
  $region114: #{forward_pallas.1} parent=0 // pred_check
    _
  $region115: #{forward_pallas.1} parent=0 // pred_check_branch
    %791 = sbr.rel (0) target = $region117
  $region116: #{forward_pallas.1} parent=0 // pred_region
    _
  $region117: #{forward_pallas.1} parent=0 // pred_fallthru
    _

</llo_original>
